<compile_context>
chip_gen: v7x
topology: tpu7x:2x2x1
jax: 0.10.0
libtpu: 0.0.40
codegen_flags: <defaults>
</compile_context>

<pallas_src>
import jax
import jax.numpy as jnp
from jax.experimental import pallas as pl
from jax.experimental.pallas import tpu as pltpu

_E8P_SCALE = 1.03
_TARGET_TILE_BYTES = 4 << 20   # ~4 MiB input tile -> ~8 MiB double-buffered
_FALLBACK_COLS = 512           # lane width for the flatten-and-rechunk fallback


def _ceil_to(a, m):
    return -(-a // m) * m


def _make_sumsq_kernel(rows, tm, steps, mask_rows):
    """Per-partition partial sum of squares.

    grid = (P, S): axis 0 = row partitions ("parallel", v7x megacore),
    axis 1 = reduction steps within the partition ("arbitrary").
    acc_ref : (8, cols) f32 VMEM accumulator — steady state is pure VPU work.
    out_ref : (1, 8, cols) per-partition partials, written once in epilogue.
    `mask_rows` is a trace-time flag: masking code is only emitted when the
    row extent is not tile-aligned (no host-side zero-pad copy needed).
    """

    def kernel(x_ref, out_ref, acc_ref):
        s = pl.program_id(1)

        @pl.when(s == 0)
        def _init():
            acc_ref[...] = jnp.zeros_like(acc_ref)

        tmk, cols = x_ref.shape
        xt = x_ref[...].astype(jnp.float32)   # native-dtype DMA, f32 in-register
        if mask_rows:
            # Nominal (unclamped) global row offset of this tile; rows past the
            # real extent read unspecified data -> zero them before squaring.
            # Pure VPU work, hidden under the HBM stream of the next tile.
            tile_off = (pl.program_id(0) * steps + s) * tm
            ridx = jax.lax.broadcasted_iota(jnp.int32, (tmk, cols), 0)
            xt = jnp.where(ridx < (rows - tile_off), xt, 0.0)
        sq = xt * xt
        # Fold groups of 8 rows onto each other: elementwise vreg adds (VPU
        # only), no cross-lane/sublane movement in the steady state.
        acc_ref[...] += sq.reshape(tmk // 8, 8, cols).sum(axis=0)

        @pl.when(s == pl.num_programs(1) - 1)
        def _finalize():
            out_ref[...] = acc_ref[...].reshape(1, 8, cols)

    return kernel


def _find_params_pallas(x, scale_override, target_tile_bytes=_TARGET_TILE_BYTES):
    """Compute ||x||_2 / sqrt(numel) / divisor via a Pallas reduction kernel."""
    numel = int(x.size)
    itemsize = jnp.dtype(x.dtype).itemsize
    # sublane pack: 8 (4-byte), 16 (2-byte), 32 (1-byte)
    pack = max(8, 32 // itemsize)

    # --- choose a 2-D streaming view (sum of squares is layout agnostic) ----
    direct = (
        x.ndim >= 2
        and x.shape[-1] % 128 == 0
        and (numel // x.shape[-1]) % 8 == 0
        and pack * x.shape[-1] * itemsize <= 2 * target_tile_bytes
    )
    if direct:
        x2 = x.reshape(-1, x.shape[-1])        # free view, no HBM copy
    else:
        # Rare fallback (1-D tensors / unaligned trailing dim / huge rows):
        # flatten and re-chunk into lane-aligned rows.  Zero padding does not
        # change sum(x^2).
        flat = x.reshape(-1)
        chunk = _FALLBACK_COLS * pack
        padn = (-numel) % chunk
        if padn:
            flat = jnp.pad(flat, (0, padn))
        x2 = flat.reshape(-1, _FALLBACK_COLS)

    rows, cols = x2.shape
    row_bytes = cols * itemsize

    # Largest pack-aligned row tile within the target budget (mem-bound kernel:
    # big tiles amortize the per-grid-step overhead).
    tm = max(pack, (target_tile_bytes // row_bytes) // pack * pack)
    tm = min(tm, _ceil_to(rows, pack))

    n_tiles = -(-rows // tm)
    # Two row partitions so v7x can shard the leading "parallel" axis over both
    # TensorCores; harmless (sequential) on single-core v5e/v6e.
    n_parts = 2 if n_tiles >= 4 else 1
    steps = -(-n_tiles // n_parts)

    # If the rectangular (P, S) grid has more slots than real tiles (odd tile
    # counts), clamp the block index: the surplus slot re-reads the last real
    # tile (in-bounds DMA) and is fully masked out in-kernel.
    clamp = n_parts * steps > n_tiles
    mask_rows = n_parts * steps * tm != rows
    last_block = n_tiles - 1

    def in_index_map(p, s):
        idx = p * steps + s
        if clamp:
            idx = jnp.minimum(idx, last_block)
        return (idx, 0)

    divisor = scale_override if scale_override > 0 else _E8P_SCALE

    tile_bytes = tm * cols * itemsize
    need = 2 * tile_bytes + 8 * cols * 4 + 2 * n_parts * 8 * cols * 4 + (2 << 20)
    cparams = {"dimension_semantics": ("parallel", "arbitrary")}
    if need > (12 << 20):
        # extremely wide rows: raise scoped-VMEM limit instead of shrinking the
        # tile below one sublane pack
        cparams["vmem_limit_bytes"] = int(min(need, 48 << 20))

    partials = pl.pallas_call(
        _make_sumsq_kernel(rows, tm, steps, mask_rows),
        out_shape=jax.ShapeDtypeStruct((n_parts, 8, cols), jnp.float32),
        grid_spec=pltpu.PrefetchScalarGridSpec(
            num_scalar_prefetch=0,
            grid=(n_parts, steps),
            in_specs=[pl.BlockSpec((tm, cols), in_index_map)],
            out_specs=pl.BlockSpec((1, 8, cols), lambda p, s: (p, 0, 0)),
            scratch_shapes=[pltpu.VMEM((8, cols), jnp.float32)],
        ),
        compiler_params=pltpu.CompilerParams(**cparams),
        cost_estimate=pl.CostEstimate(
            flops=2 * rows * cols,
            transcendentals=0,
            bytes_accessed=rows * cols * itemsize + n_parts * 8 * cols * 4,
        ),
    )(x2)

    # Tiny epilogue outside the kernel: final cross-lane reduce + sqrt + scale.
    total = jnp.sum(partials)
    scale = jnp.sqrt(total) * (1.0 / float(numel) ** 0.5) * (1.0 / float(divisor))
    return scale.reshape((1,)).astype(jnp.float32)


class E8PWeightQuantizer:
    """JAX/Pallas port of the PyTorch E8PWeightQuantizer."""

    def __init__(self, shape=1):
        # buffer `scale` initialized deterministically to zeros
        self.scale = jnp.zeros((shape,), dtype=jnp.float32)
        self.quantized_weight = None

    def configure(self, bits, perchannel=False, sym=True, mse=False, norm=2.4,
                  grid=100, maxshrink=0.8, scale_override=0.9, **kwargs):
        self.bits = bits
        self.perchannel = perchannel
        self.sym = sym
        self.mse = mse
        self.norm = norm
        self.grid = grid
        self.maxshrink = maxshrink
        self.scale_override = scale_override

    def find_params(self, x, target_tile_bytes=_TARGET_TILE_BYTES):
        if self.bits == 16:
            return
        self.scale = _find_params_pallas(x, self.scale_override,
                                         target_tile_bytes=target_tile_bytes)
        return self.scale

    def forward(self, x):
        # TODO(synk): PyTorch forward raises NotImplementedError — nothing to port.
        raise NotImplementedError

    def quantize(self, x, qat=True):
        if qat:
            raise NotImplementedError
        assert self.quantized_weight is not None, \
            "the quantized weight is not set: quantize with the LDLQ first"
        return self.quantized_weight

    def ready(self):
        return bool(jnp.all(self.scale != 0))


if __name__ == "__main__":
    key = jax.random.PRNGKey(0)

    # Test 1: small f32 weight matrix (out_features=32, in_features=128);
    # single-tile direct path, no masking.
    x = jax.random.normal(key, (32, 128), dtype=jnp.float32)
    q = E8PWeightQuantizer(shape=1)
    q.configure(bits=2, perchannel=False, sym=True)
    scale = jax.block_until_ready(q.find_params(x))
    ref = jnp.sqrt(jnp.sum(x.astype(jnp.float32) ** 2)) / (x.size ** 0.5) / 0.9
    assert jnp.allclose(scale[0], ref, rtol=1e-5, atol=1e-6), (scale, ref)
    assert q.ready()

    # Test 2: bf16 weight with ragged rows — exercises the multi-partition,
    # multi-step pipeline, in-kernel row masking, index_map clamping (odd tile
    # count) and the scale_override=0 branch.  Small target tile so this small
    # shape still produces several grid steps.
    k2 = jax.random.PRNGKey(0)
    x2 = jax.random.normal(k2, (560, 256), dtype=jnp.float32).astype(jnp.bfloat16)
    q2 = E8PWeightQuantizer(shape=1)
    q2.configure(bits=2, scale_override=0.0)
    scale2 = jax.block_until_ready(q2.find_params(x2, target_tile_bytes=64 << 10))
    ref2 = (jnp.sqrt(jnp.sum(x2.astype(jnp.float32) ** 2))
            / (x2.size ** 0.5) / _E8P_SCALE)
    assert jnp.allclose(scale2[0], ref2, rtol=1e-4, atol=1e-6), (scale2, ref2)
    assert q2.ready()

    # Test 3: 1-D tensor — exercises the flatten-and-rechunk fallback path.
    k3 = jax.random.PRNGKey(0)
    x3 = jax.random.normal(k3, (300,), dtype=jnp.float32)
    q3 = E8PWeightQuantizer(shape=1)
    q3.configure(bits=2, scale_override=0.9)
    scale3 = jax.block_until_ready(q3.find_params(x3))
    ref3 = jnp.sqrt(jnp.sum(x3 ** 2)) / (x3.size ** 0.5) / 0.9
    assert jnp.allclose(scale3[0], ref3, rtol=1e-5, atol=1e-6), (scale3, ref3)
    assert q3.ready()

    print("KERNEL_OK")
</pallas_src>

<mosaic_0001>
module attributes {stable_mosaic.version = 11 : i64} {
  func.func @kernel(%arg0: i32, %arg1: i32, %arg2: memref<32x128xf32, #tpu.memory_space<vmem>>, %arg3: memref<1x8x128xf32, #tpu.memory_space<vmem>>, %arg4: memref<8x128xf32, #tpu.memory_space<vmem>>) attributes {dimension_semantics = [#tpu.dimension_semantics<parallel>, #tpu.dimension_semantics<arbitrary>], iteration_bounds = array<i64: 1, 1>, scalar_prefetch = 0 : i64, scratch_operands = 1 : i64, tpu.core_type = #tpu.core_type<tc>, window_params = [{transform_indices = @transform_0, window_bounds = array<i64: 32, 128>}, {transform_indices = @transform_1, window_bounds = array<i64: 1, 8, 128>}]} {
    %c0_i32 = arith.constant 0 : i32
    %0 = arith.cmpi eq, %arg1, %c0_i32 : i32
    %1 = arith.extui %0 : i1 to i32
    %c0_i32_0 = arith.constant 0 : i32
    %2 = arith.cmpi ne, %1, %c0_i32_0 : i32
    scf.if %2 {
      %cst_8 = arith.constant 0.000000e+00 : f32
      %13 = vector.broadcast %cst_8 : f32 to vector<8x128xf32>
      %c0_9 = arith.constant 0 : index
      %c0_10 = arith.constant 0 : index
      %14 = vector.load %arg4[%c0_9, %c0_10] : memref<8x128xf32, #tpu.memory_space<vmem>>, vector<8x128xf32>
      tpu.vector_store %arg4[%c0_9, %c0_10], %13 {strides = array<i32>} : memref<8x128xf32, #tpu.memory_space<vmem>>, vector<8x128xf32>,
    } else {
    }
    %c0 = arith.constant 0 : index
    %c0_1 = arith.constant 0 : index
    %3 = vector.load %arg2[%c0, %c0_1] : memref<32x128xf32, #tpu.memory_space<vmem>>, vector<32x128xf32>
    %4 = arith.mulf %3, %3 : vector<32x128xf32>
    %c0_2 = arith.constant 0 : index
    %c0_3 = arith.constant 0 : index
    %5 = vector.load %arg4[%c0_2, %c0_3] : memref<8x128xf32, #tpu.memory_space<vmem>>, vector<8x128xf32>
    %6 = vector.shape_cast %4 : vector<32x128xf32> to vector<4x8x128xf32>
    %cst = arith.constant dense<0.000000e+00> : vector<8x128xf32>
    %7 = vector.multi_reduction <add>, %6, %cst [0] : vector<4x8x128xf32> to vector<8x128xf32>
    %8 = arith.addf %5, %7 : vector<8x128xf32>
    %c0_4 = arith.constant 0 : index
    %c0_5 = arith.constant 0 : index
    %9 = vector.load %arg4[%c0_4, %c0_5] : memref<8x128xf32, #tpu.memory_space<vmem>>, vector<8x128xf32>
    tpu.vector_store %arg4[%c0_4, %c0_5], %8 {strides = array<i32>} : memref<8x128xf32, #tpu.memory_space<vmem>>, vector<8x128xf32>,
    %c0_i32_6 = arith.constant 0 : i32
    %10 = arith.cmpi eq, %arg1, %c0_i32_6 : i32
    %11 = arith.extui %10 : i1 to i32
    %c0_i32_7 = arith.constant 0 : i32
    %12 = arith.cmpi ne, %11, %c0_i32_7 : i32
    scf.if %12 {
      %c0_8 = arith.constant 0 : index
      %c0_9 = arith.constant 0 : index
      %13 = vector.load %arg4[%c0_8, %c0_9] : memref<8x128xf32, #tpu.memory_space<vmem>>, vector<8x128xf32>
      %14 = vector.shape_cast %13 : vector<8x128xf32> to vector<1x8x128xf32>
      %c0_10 = arith.constant 0 : index
      %c0_11 = arith.constant 0 : index
      %c0_12 = arith.constant 0 : index
      %15 = vector.load %arg3[%c0_10, %c0_11, %c0_12] : memref<1x8x128xf32, #tpu.memory_space<vmem>>, vector<1x8x128xf32>
      tpu.vector_store %arg3[%c0_10, %c0_11, %c0_12], %14 {strides = array<i32>} : memref<1x8x128xf32, #tpu.memory_space<vmem>>, vector<1x8x128xf32>,
    } else {
    }
    return
  }
  func.func @transform_0(%arg0: i32, %arg1: i32) -> (i32, i32) {
    %c1_i32 = arith.constant 1 : i32
    %0 = arith.muli %arg0, %c1_i32 : i32
    %1 = arith.addi %0, %arg1 : i32
    %c0_i32 = arith.constant 0 : i32
    %c0_i32_0 = arith.constant 0 : i32
    return %1, %c0_i32 : i32, i32
  }
  func.func @transform_1(%arg0: i32, %arg1: i32) -> (i32, i32, i32) {
    %c0_i32 = arith.constant 0 : i32
    %c0_i32_0 = arith.constant 0 : i32
    %c0_i32_1 = arith.constant 0 : i32
    return %arg0, %c0_i32, %c0_i32_0 : i32, i32, i32
  }
}

</mosaic_0001>

<llo_original>
// kernel: tpu_custom_call.1
$region0: #{tpu_custom_call.1}
  #allocation0 [shape = 'u32[]', space=smem, size = 0x4, offset = 0x4, fixed_abs, tag = 'smem constant byte address 0x4 - core index']
  #allocation1 [shape = 'u32[144,128]{1,0:T(1,128)}', space=vmem, size = 0x12000, scoped, tag = 'internal scratch']
  #allocation2 [shape = 'f32[8,128]{1,0:T(8,128)}', space=vmem, size = 0x1000, scoped, tag = 'scratch operand']
  %s0 = inlined_call_operand.hbm [shape: f32[32,128], index: 0, kind: input, shape index: {}]
  %s1 = inlined_call_operand.hbm [shape: f32[1,8,128], index: 1, kind: output, shape index: {}]
  %s2 = sld [smem:[#allocation0]]
  $region26: #{tpu_custom_call.1} parent=0
    _
  %s4 = ssub.s32 1, %s2
  %s5 = scalar_select 0, %s4, %s2
  $region1: #{tpu_custom_call.1} parent=0
    #allocation3 [shape = 'u8[16384]{0}', space=vmem, size = 0x4000, scoped, tag = 'input window, operand 0, single buffered']
    #allocation4 [shape = 's32[1]{0}', space=sflag, size = 0x4, scoped, tag = 'scoped memory for tpu_custom_call.1']
    #allocation5 [shape = 's32[1]{0}', space=sflag, size = 0x4, scoped, tag = 'scoped memory for tpu_custom_call.1']
    #allocation6 [shape = 'u8[4096]{0}', space=vmem, size = 0x1000, scoped, tag = 'output window, operand 0, single buffered']
    %6 = vsyncpa [#allocation4], 0
    %7 = vsyncpa [#allocation5], 0
    // Predicated region
    $region2: #{tpu_custom_call.1} parent=1 // pred_check
      _
    $region3: #{tpu_custom_call.1} parent=1 // pred_check_branch
      %9 = sbr.rel (0) target = $region5
    $region4: #{tpu_custom_call.1} parent=1 // pred_region
      %s10 = sadd.s32 0, 0
      %s11 = smul.u32 4, %s10
      %s13 = ssub.s32 512, 512
      %14 = vsyncadd [#allocation4], %s13
      %s15 = smul.addr %s11, 128
      %s16 = scalar_lea.hbm %s0, %s15
      %s17 = sshll.u32 [#allocation3], 4
      %s18 = int_to_ptr.vmem [resolvable:$true] %s17
      %23 = dma.hbm_to_vmem [thread:$0]  %s16, 512, %s18, [#allocation4], 128, 128, 8
    $region5: #{tpu_custom_call.1} parent=1 // pred_fallthru
      _
    // Predicated region
    $region6: #{tpu_custom_call.1} parent=1 // pred_check
      _
    $region7: #{tpu_custom_call.1} parent=1 // pred_check_branch
      %25 = sbr.rel (0) target = $region9
    $region8: #{tpu_custom_call.1} parent=1 // pred_region
      %26 = dma.done [#allocation4], 512
    $region9: #{tpu_custom_call.1} parent=1 // pred_fallthru
      _
    %s27 = sadd.s32 0, 0
    %s28 = smul.u32 4, %s27
    %p29 = scmp.eq.s32.totalorder 0, 0
    // Predicated region
    $region10: #{tpu_custom_call.1} parent=1 // pred_check
      %p30 = pneg %p29
    $region11: #{tpu_custom_call.1} parent=1 // pred_check_branch
      %32 = sbr.rel (%p30) target = $region13
    $region12: #{tpu_custom_call.1} parent=1 // pred_region
      %33 = vst [vmem:[#allocation2] sm:$0xff] 0.0
    $region13: #{tpu_custom_call.1} parent=1 // pred_fallthru
      _
    %v34 = vld [vmem:[#allocation3] sm:$0xff]
    %v35 = vld [vmem:[#allocation3 + $0x8] sm:$0xff]
    %v36 = vld [vmem:[#allocation3 + $0x10] sm:$0xff]
    %v37 = vld [vmem:[#allocation3 + $0x18] sm:$0xff]
    %v38 = vmul.f32 %v34, %v34
    %v39 = vmul.f32 %v35, %v35
    %v40 = vmul.f32 %v36, %v36
    %v41 = vmul.f32 %v37, %v37
    %v42 = vld [vmem:[#allocation2] sm:$0xff]
    %v43 = vadd.f32 %v38, %v39
    %v44 = vadd.f32 %v43, %v40
    %v45 = vadd.f32 %v44, %v41
    %v46 = vadd.f32 %v42, %v45
    %47 = vst [vmem:[#allocation2] sm:$0xff] %v46
    // Predicated region
    $region14: #{tpu_custom_call.1} parent=1 // pred_check
      %p48 = pneg %p29
    $region15: #{tpu_custom_call.1} parent=1 // pred_check_branch
      %50 = sbr.rel (%p48) target = $region17
    $region16: #{tpu_custom_call.1} parent=1 // pred_region
      %v51 = vld [vmem:[#allocation2] sm:$0xff]
      %52 = vst [vmem:[#allocation6] sm:$0xff] %v51
    $region17: #{tpu_custom_call.1} parent=1 // pred_fallthru
      _
    // Predicated region
    $region18: #{tpu_custom_call.1} parent=1 // pred_check
      _
    $region19: #{tpu_custom_call.1} parent=1 // pred_check_branch
      %54 = sbr.rel (0) target = $region21
    $region20: #{tpu_custom_call.1} parent=1 // pred_region
      %s56 = ssub.s32 128, 128
      %57 = vsyncadd [#allocation5], %s56
      %s59 = sshll.u32 [#allocation6], 4
      %s60 = int_to_ptr.vmem [resolvable:$true] %s59
      %62 = dma.vmem_to_hbm [thread:$0]  %s60, 128, %s1, [#allocation5]
    $region21: #{tpu_custom_call.1} parent=1 // pred_fallthru
      _
    // Predicated region
    $region22: #{tpu_custom_call.1} parent=1 // pred_check
      _
    $region23: #{tpu_custom_call.1} parent=1 // pred_check_branch
      %64 = sbr.rel (0) target = $region25
    $region24: #{tpu_custom_call.1} parent=1 // pred_region
      %65 = dma.done [#allocation5], 128
    $region25: #{tpu_custom_call.1} parent=1 // pred_fallthru
      _
    %66 = vsyncpa [#allocation4], 1
    %67 = vsyncpa [#allocation5], 1

</llo_original>
